<compile_context>
chip_gen: v7x
topology: tpu7x:2x2x1
jax: 0.10.0
libtpu: 0.0.40
codegen_flags: <defaults>
</compile_context>

<pallas_src>
import functools
import math

import jax
import jax.numpy as jnp
from jax.experimental import pallas as pl
from jax.experimental.pallas import tpu as pltpu


def _round_up(v, m):
    return ((v + m - 1) // m) * m


def _gated_tconv_kernel(x_ref, w_ref, b_ref, o_ref, *, kernel, dia, n, t_new,
                        c_out, c_out_pad):
    # x_ref: (1, T*n, c_in)              bf16/f32  channels-last, time-major rows
    # w_ref: (kernel, c_in, 2*c_out_pad) bf16      per-tap [P(+self) | Q] column slabs
    # b_ref: (1, 2*c_out_pad)            f32       [bias_p + bias_self | bias_q]
    # o_ref: (1, t_new*n, c_out)         out dtype (unpadded lanes)
    rows = t_new * n
    acc = jnp.zeros((rows, 2 * c_out_pad), jnp.float32)
    for k in range(kernel):                       # static unroll, kernel is 2..3
        start = k * dia * n                       # static row offset of tap k
        xs = x_ref[0, start:start + rows, :].astype(jnp.bfloat16)
        acc = acc + jnp.dot(xs, w_ref[k], preferred_element_type=jnp.float32)
    acc = acc + b_ref[...]                        # single f32 bias add
    p = acc[:, :c_out_pad]                        # P (+ fused self path)
    q = acc[:, c_out_pad:]                        # Q starts on a vreg boundary
    gated = p * jax.nn.sigmoid(q)                 # f32 on VPU / EUP
    o_ref[0, :, :] = gated[:, :c_out].astype(o_ref.dtype)


def temporal_conv_layer_nhwc(x, w_conv, b_conv, w_self, b_self, *, kernel, dia,
                             c_out, out_dtype=jnp.bfloat16):
    """Channels-last core: x (b, T, n, c_in) -> (b, T_new, n, c_out)."""
    b, t, n, c_in = x.shape
    t_new = t - dia * (kernel - 1)
    rows = t_new * n
    lane = 128
    c_out_pad = _round_up(c_out, lane)
    pad_cols = c_out_pad - c_out

    # Fused weight (kernel, c_in, 2*c_out_pad).  The self/residual path acts on
    # x[:, -T_new:, :, :] which is exactly the last tap's time slice, so it is
    # folded into that tap's P-column block.
    wk = jnp.transpose(w_conv[:, :, :, 0], (2, 1, 0)).astype(jnp.float32)  # (K, c_in, 2*c_out)
    wp = wk[..., :c_out]
    wq = wk[..., c_out:]
    wp = wp.at[kernel - 1].add(jnp.transpose(w_self, (1, 0)).astype(jnp.float32))
    wp = jnp.pad(wp, ((0, 0), (0, 0), (0, pad_cols)))
    wq = jnp.pad(wq, ((0, 0), (0, 0), (0, pad_cols)))
    w_fused = jnp.concatenate([wp, wq], axis=-1).astype(jnp.bfloat16)

    bias_p = b_conv.astype(jnp.float32)[:c_out] + b_self.astype(jnp.float32)
    bias_q = b_conv.astype(jnp.float32)[c_out:]
    bias = jnp.concatenate([jnp.pad(bias_p, (0, pad_cols)),
                            jnp.pad(bias_q, (0, pad_cols))]).reshape(1, 2 * c_out_pad)

    # Flatten (T, n) -> rows (free, contiguous) so the dilated taps become static
    # row-slices inside the kernel — no im2col materialization, no row padding.
    x2 = x.reshape(b, t * n, c_in)

    kern = functools.partial(_gated_tconv_kernel, kernel=kernel, dia=dia, n=n,
                             t_new=t_new, c_out=c_out, c_out_pad=c_out_pad)
    cost = pl.CostEstimate(
        flops=2 * b * rows * kernel * c_in * (2 * c_out_pad) + 4 * b * rows * c_out_pad,
        transcendentals=b * rows * c_out_pad,
        bytes_accessed=(x2.size * x2.dtype.itemsize + w_fused.size * 2 + bias.size * 4
                        + b * rows * c_out * jnp.dtype(out_dtype).itemsize),
    )

    out = pl.pallas_call(
        kern,
        out_shape=jax.ShapeDtypeStruct((b, rows, c_out), out_dtype),
        grid=(b,),
        in_specs=[
            pl.BlockSpec((1, t * n, c_in), lambda i: (i, 0, 0)),
            pl.BlockSpec((kernel, c_in, 2 * c_out_pad), lambda i: (0, 0, 0)),
            pl.BlockSpec((1, 2 * c_out_pad), lambda i: (0, 0)),
        ],
        out_specs=pl.BlockSpec((1, rows, c_out), lambda i: (i, 0, 0)),
        compiler_params=pltpu.CompilerParams(dimension_semantics=("parallel",)),
        cost_estimate=cost,
    )(x2, w_fused, bias)
    # TODO(synk): for very large T*n (block >> VMEM budget) add a node-tile grid axis.

    return out.reshape(b, t_new, n, c_out)


def temporal_conv_layer(x_nchw, w_conv, b_conv, w_self, b_self, *, kernel, dia,
                        c_out, out_dtype=jnp.bfloat16):
    """Spec-compatible NCHW wrapper around the channels-last core.

    x_nchw : (b, c_in, T, n)              PyTorch NCHW input
    w_conv : (2*c_out, c_in, kernel, 1)   Conv2d weight of the dilated (kernel,1) conv
    b_conv : (2*c_out,)
    w_self : (c_out, c_in)                self path (1x1 conv, or eye for identity/zero-pad)
    b_self : (c_out,)
    returns: (b, c_out, T_new, n) with T_new = T - dia*(kernel-1)
    """
    # Boundary transposes only; in an STGCN stack prefer temporal_conv_layer_nhwc
    # end-to-end so these HBM shuffle passes disappear.
    x_cl = jnp.transpose(x_nchw, (0, 2, 3, 1)).astype(jnp.bfloat16)
    out = temporal_conv_layer_nhwc(x_cl, w_conv, b_conv, w_self, b_self,
                                   kernel=kernel, dia=dia, c_out=c_out,
                                   out_dtype=out_dtype)
    return jnp.transpose(out, (0, 3, 1, 2))


def reference_forward(x, w_conv, b_conv, w_self, b_self, *, kernel, dia, c_out):
    """Plain-JAX (f32) reproduction of the PyTorch forward (NCHW), for checking."""
    b, c_in, t, n = x.shape
    t_new = t - dia * (kernel - 1)
    conv = jnp.broadcast_to(b_conv[None, :, None, None], (b, 2 * c_out, t_new, n))
    for k in range(kernel):
        conv = conv + jnp.einsum('oi,bitn->botn', w_conv[:, :, k, 0],
                                 x[:, :, k * dia:k * dia + t_new, :])
    x_self = jnp.einsum('oi,bitn->botn', w_self, x) + b_self[None, :, None, None]
    x_self = x_self[:, :, -t_new:, :]
    p = conv[:, :c_out]
    q = conv[:, c_out:]
    return (p + x_self) * jax.nn.sigmoid(q)


def _run_case(key, *, b, c_in, c_out, T, n, kernel, dia):
    k1, k2, k3, k4, k5 = jax.random.split(key, 5)
    x = jax.random.normal(k1, (b, c_in, T, n), jnp.float32)
    w_conv = jax.random.normal(k2, (2 * c_out, c_in, kernel, 1), jnp.float32) \
        * (1.0 / math.sqrt(c_in * kernel))
    b_conv = jax.random.normal(k3, (2 * c_out,), jnp.float32) * 0.1

    if c_in > c_out:
        # nn.Conv2d(c_in, c_out, (1,1)) path (deterministic synthetic weights)
        w_self = jax.random.normal(k4, (c_out, c_in), jnp.float32) * (1.0 / math.sqrt(c_in))
        b_self = jax.random.normal(k5, (c_out,), jnp.float32) * 0.1
    else:
        # c_in <= c_out: identity into first c_in channels, zero-pad the rest
        w_self = jnp.eye(c_out, c_in, dtype=jnp.float32)
        b_self = jnp.zeros((c_out,), jnp.float32)

    fwd = jax.jit(functools.partial(temporal_conv_layer,
                                    kernel=kernel, dia=dia, c_out=c_out))
    out = jax.block_until_ready(fwd(x, w_conv, b_conv, w_self, b_self))

    ref = reference_forward(x, w_conv, b_conv, w_self, b_self,
                            kernel=kernel, dia=dia, c_out=c_out)
    assert out.shape == ref.shape, (out.shape, ref.shape)
    # bf16 matmul inputs / bf16 output (f32 accumulation) -> loosened tolerance.
    assert jnp.allclose(out.astype(jnp.float32), ref, atol=5e-2, rtol=5e-2), \
        "mismatch vs reference"
    return out


if __name__ == "__main__":
    key = jax.random.PRNGKey(0)
    k_a, k_b, k_c = jax.random.split(key, 3)

    # c_in < c_out  -> zero-pad residual path
    _run_case(k_a, b=2, c_in=4, c_out=8, T=16, n=16, kernel=2, dia=2)
    # c_in > c_out  -> 1x1 conv_self residual path
    _run_case(k_b, b=2, c_in=8, c_out=4, T=16, n=16, kernel=3, dia=1)
    # c_in == c_out -> identity residual path
    _run_case(k_c, b=2, c_in=8, c_out=8, T=12, n=16, kernel=3, dia=2)

    print("KERNEL_OK")
</pallas_src>

<mosaic_0001>
module attributes {stable_mosaic.version = 11 : i64} {
  func.func @_gated_tconv_kernel(%arg0: i32, %arg1: memref<1x256x4xbf16, #tpu.memory_space<vmem>>, %arg2: memref<2x4x256xbf16, #tpu.memory_space<vmem>>, %arg3: memref<1x256xf32, #tpu.memory_space<vmem>>, %arg4: memref<1x224x8xbf16, #tpu.memory_space<vmem>>) attributes {dimension_semantics = [#tpu.dimension_semantics<parallel>], iteration_bounds = array<i64: 2>, scalar_prefetch = 0 : i64, scratch_operands = 0 : i64, tpu.core_type = #tpu.core_type<tc>, window_params = [{transform_indices = @transform_0, window_bounds = array<i64: 1, 256, 4>}, {pipeline_mode = #tpu.pipeline_mode<synchronous>, transform_indices = @transform_1, window_bounds = array<i64: 2, 4, 256>}, {pipeline_mode = #tpu.pipeline_mode<synchronous>, transform_indices = @transform_2, window_bounds = array<i64: 1, 256>}, {transform_indices = @transform_3, window_bounds = array<i64: 1, 224, 8>}]} {
    %cst = arith.constant 0.000000e+00 : f32
    %0 = vector.broadcast %cst : f32 to vector<224x256xf32>
    %c0 = arith.constant 0 : index
    %c0_0 = arith.constant 0 : index
    %c0_1 = arith.constant 0 : index
    %1 = vector.load %arg1[%c0, %c0_0, %c0_1] : memref<1x256x4xbf16, #tpu.memory_space<vmem>>, vector<1x224x4xbf16>
    %2 = vector.shape_cast %1 : vector<1x224x4xbf16> to vector<224x4xbf16>
    %c0_2 = arith.constant 0 : index
    %c0_3 = arith.constant 0 : index
    %c0_4 = arith.constant 0 : index
    %3 = vector.load %arg2[%c0_2, %c0_3, %c0_4] : memref<2x4x256xbf16, #tpu.memory_space<vmem>>, vector<1x4x256xbf16>
    %4 = vector.shape_cast %3 : vector<1x4x256xbf16> to vector<4x256xbf16>
    %cst_5 = arith.constant dense<0.000000e+00> : vector<224x256xf32>
    %5 = tpu.matmul %2, %4, %cst_5 {dimension_numbers = #tpu.dot_dimension_numbers<[1], [0], [0], [1], [0, 0, 1, 1], [], []>} : vector<224x4xbf16>, vector<4x256xbf16>, vector<224x256xf32> -> vector<224x256xf32>
    %6 = arith.addf %0, %5 : vector<224x256xf32>
    %c0_6 = arith.constant 0 : index
    %c32 = arith.constant 32 : index
    %c0_7 = arith.constant 0 : index
    %7 = vector.load %arg1[%c0_6, %c32, %c0_7] : memref<1x256x4xbf16, #tpu.memory_space<vmem>>, vector<1x224x4xbf16>
    %8 = vector.shape_cast %7 : vector<1x224x4xbf16> to vector<224x4xbf16>
    %c1 = arith.constant 1 : index
    %c0_8 = arith.constant 0 : index
    %c0_9 = arith.constant 0 : index
    %9 = vector.load %arg2[%c1, %c0_8, %c0_9] : memref<2x4x256xbf16, #tpu.memory_space<vmem>>, vector<1x4x256xbf16>
    %10 = vector.shape_cast %9 : vector<1x4x256xbf16> to vector<4x256xbf16>
    %cst_10 = arith.constant dense<0.000000e+00> : vector<224x256xf32>
    %11 = tpu.matmul %8, %10, %cst_10 {dimension_numbers = #tpu.dot_dimension_numbers<[1], [0], [0], [1], [0, 0, 1, 1], [], []>} : vector<224x4xbf16>, vector<4x256xbf16>, vector<224x256xf32> -> vector<224x256xf32>
    %12 = arith.addf %6, %11 : vector<224x256xf32>
    %c0_11 = arith.constant 0 : index
    %c0_12 = arith.constant 0 : index
    %13 = vector.load %arg3[%c0_11, %c0_12] : memref<1x256xf32, #tpu.memory_space<vmem>>, vector<1x256xf32>
    %14 = vector.broadcast %13 : vector<1x256xf32> to vector<224x256xf32>
    %15 = arith.addf %12, %14 : vector<224x256xf32>
    %16 = vector.extract_strided_slice %15 {offsets = [0, 0], sizes = [224, 128], strides = [1, 1]} : vector<224x256xf32> to vector<224x128xf32>
    %17 = vector.extract_strided_slice %15 {offsets = [0, 128], sizes = [224, 128], strides = [1, 1]} : vector<224x256xf32> to vector<224x128xf32>
    %18 = arith.negf %17 : vector<224x128xf32>
    %19 = math.exp %18 : vector<224x128xf32>
    %cst_13 = arith.constant 1.000000e+00 : f32
    %20 = vector.broadcast %cst_13 : f32 to vector<224x128xf32>
    %21 = arith.addf %20, %19 : vector<224x128xf32>
    %22 = arith.divf %20, %21 : vector<224x128xf32>
    %23 = arith.mulf %16, %22 : vector<224x128xf32>
    %24 = vector.extract_strided_slice %23 {offsets = [0, 0], sizes = [224, 8], strides = [1, 1]} : vector<224x128xf32> to vector<224x8xf32>
    %25 = arith.truncf %24 : vector<224x8xf32> to vector<224x8xbf16>
    %c0_14 = arith.constant 0 : index
    %c0_15 = arith.constant 0 : index
    %c0_16 = arith.constant 0 : index
    %26 = vector.load %arg4[%c0_14, %c0_15, %c0_16] : memref<1x224x8xbf16, #tpu.memory_space<vmem>>, vector<1x224x8xbf16>
    %27 = vector.shape_cast %26 : vector<1x224x8xbf16> to vector<224x8xbf16>
    %28 = vector.shape_cast %25 : vector<224x8xbf16> to vector<1x224x8xbf16>
    tpu.vector_store %arg4[%c0_14, %c0_15, %c0_16], %28 {strides = array<i32>} : memref<1x224x8xbf16, #tpu.memory_space<vmem>>, vector<1x224x8xbf16>,
    return
  }
  func.func @transform_0(%arg0: i32) -> (i32, i32, i32) {
    %c0_i32 = arith.constant 0 : i32
    %c0_i32_0 = arith.constant 0 : i32
    %c0_i32_1 = arith.constant 0 : i32
    return %arg0, %c0_i32, %c0_i32_0 : i32, i32, i32
  }
  func.func @transform_1(%arg0: i32) -> (i32, i32, i32) {
    %c0_i32 = arith.constant 0 : i32
    %c0_i32_0 = arith.constant 0 : i32
    %c0_i32_1 = arith.constant 0 : i32
    %c0_i32_2 = arith.constant 0 : i32
    return %c0_i32, %c0_i32_0, %c0_i32_1 : i32, i32, i32
  }
  func.func @transform_2(%arg0: i32) -> (i32, i32) {
    %c0_i32 = arith.constant 0 : i32
    %c0_i32_0 = arith.constant 0 : i32
    %c0_i32_1 = arith.constant 0 : i32
    return %c0_i32, %c0_i32_0 : i32, i32
  }
  func.func @transform_3(%arg0: i32) -> (i32, i32, i32) {
    %c0_i32 = arith.constant 0 : i32
    %c0_i32_0 = arith.constant 0 : i32
    %c0_i32_1 = arith.constant 0 : i32
    return %arg0, %c0_i32, %c0_i32_0 : i32, i32, i32
  }
}

</mosaic_0001>

<llo_original>
// kernel: temporal_conv_layer.1
$region0: #{temporal_conv_layer.1}
  #allocation0 [shape = 'u32[]', space=smem, size = 0x4, offset = 0x4, fixed_abs, tag = 'smem constant byte address 0x4 - core index']
  #allocation1 [shape = 'u32[144,128]{1,0:T(1,128)}', space=vmem, size = 0x12000, scoped, tag = 'internal scratch']
  %s0 = inlined_call_operand.vmem [shape: bf16[2,256,4], index: 0, kind: input, shape index: {}]
  %s1 = inlined_call_operand.vmem [shape: bf16[2,4,256], index: 1, kind: input, shape index: {}]
  %s2 = inlined_call_operand.vmem [shape: f32[1,256], index: 2, kind: input, shape index: {}]
  %s3 = inlined_call_operand.vmem [shape: bf16[2,224,8], index: 3, kind: output, shape index: {}]
  %s4 = sld [smem:[#allocation0]]
  $region45: #{temporal_conv_layer.1} parent=0
    _
  %s6 = ssub.s32 1, %s4
  %s7 = scalar_select 0, %s6, %s4
  loop: start=0, step=1, limit=4
  $region2: #{temporal_conv_layer.1} parent=0 // loop_pre_header
    _
  $region3: #{temporal_conv_layer.1} parent=0 // loop_header
    %s9 = sphi 0, %s13
    %p10 = scmp.ge.s32.totalorder %s9, 4
    %s19 = sphi 0, %s21
    %s22 = sphi 0, %s19
    %s23 = sphi 0, %s22
    %s39 = sphi 0, %s23
    %s43 = sphi 0, %s43
    %s45 = sphi 0, %s43
    %s46 = sphi 0, %s45
    %s60 = sphi 0, %s46
    %s64 = sphi 0, %s64
    %s66 = sphi 0, %s64
    %s67 = sphi 0, %s66
    %s81 = sphi 0, %s67
    %s87 = sphi 0, %s89
    %s90 = sphi 0, %s87
    %s91 = sphi 0, %s90
    %s107 = sphi 0, %s91
  $region4: #{temporal_conv_layer.1} parent=0 // loop_header_branch
    %12 = sbr.rel (%p10) target = $region8
  $region5: #{temporal_conv_layer.1} parent=0 // loop_body
    %s14 = ssub.s32 %s9, 1
    %s15 = ssub.s32 %s9, 2
    %s16 = sadd.s32 %s9, 1
    %s17 = ssub.s32 %s9, %s16
    %p18 = scmp.eq.s32.totalorder %s17, 0
    %s20 = sadd.s32 %s19, 1
    %s21 = scalar_select %p18, %s19, %s20
    %p24 = pneg %p18
    %p25 = scmp.eq.s32.totalorder %s9, 1
    %p26 = por %p24, %p25
    %p27 = scmp.ne.s32.totalorder %s19, %s22
    %p28 = scmp.eq.s32.totalorder %s9, 0
    %p29 = por %p27, %p28
    %p30 = scmp.ne.s32.totalorder %s19, %s22
    %p31 = scmp.eq.s32.totalorder %s14, 1
    %p32 = por %p30, %p31
    %p33 = scmp.ne.s32.totalorder %s22, %s23
    %p34 = scmp.eq.s32.totalorder %s14, 0
    %p35 = por %p33, %p34
    %p36 = scmp.ne.s32.totalorder %s22, %s23
    %p37 = scmp.eq.s32.totalorder %s15, 1
    %p38 = por %p36, %p37
    %p40 = scmp.ne.s32.totalorder %s23, %s39
    %p41 = scmp.eq.s32.totalorder %s15, 0
    %p42 = por %p40, %p41
    %s44 = sadd.s32 %s43, 1
    %p47 = scmp.eq.s32.totalorder %s9, 1
    %p48 = scmp.ne.s32.totalorder %s43, %s45
    %p49 = scmp.eq.s32.totalorder %s9, 0
    %p50 = por %p48, %p49
    %p51 = scmp.ne.s32.totalorder %s43, %s45
    %p52 = scmp.eq.s32.totalorder %s14, 1
    %p53 = por %p51, %p52
    %p54 = scmp.ne.s32.totalorder %s45, %s46
    %p55 = scmp.eq.s32.totalorder %s14, 0
    %p56 = por %p54, %p55
    %p57 = scmp.ne.s32.totalorder %s45, %s46
    %p58 = scmp.eq.s32.totalorder %s15, 1
    %p59 = por %p57, %p58
    %p61 = scmp.ne.s32.totalorder %s46, %s60
    %p62 = scmp.eq.s32.totalorder %s15, 0
    %p63 = por %p61, %p62
    %s65 = sadd.s32 %s64, 1
    %p68 = scmp.eq.s32.totalorder %s9, 1
    %p69 = scmp.ne.s32.totalorder %s64, %s66
    %p70 = scmp.eq.s32.totalorder %s9, 0
    %p71 = por %p69, %p70
    %p72 = scmp.ne.s32.totalorder %s64, %s66
    %p73 = scmp.eq.s32.totalorder %s14, 1
    %p74 = por %p72, %p73
    %p75 = scmp.ne.s32.totalorder %s66, %s67
    %p76 = scmp.eq.s32.totalorder %s14, 0
    %p77 = por %p75, %p76
    %p78 = scmp.ne.s32.totalorder %s66, %s67
    %p79 = scmp.eq.s32.totalorder %s15, 1
    %p80 = por %p78, %p79
    %p82 = scmp.ne.s32.totalorder %s67, %s81
    %p83 = scmp.eq.s32.totalorder %s15, 0
    %p84 = por %p82, %p83
    %s85 = ssub.s32 %s9, %s16
    %p86 = scmp.eq.s32.totalorder %s85, 0
    %s88 = sadd.s32 %s87, 1
    %s89 = scalar_select %p86, %s87, %s88
    %p92 = pneg %p86
    %p93 = scmp.eq.s32.totalorder %s9, 1
    %p94 = por %p92, %p93
    %p95 = scmp.ne.s32.totalorder %s87, %s90
    %p96 = scmp.eq.s32.totalorder %s9, 0
    %p97 = por %p95, %p96
    %p98 = scmp.ne.s32.totalorder %s87, %s90
    %p99 = scmp.eq.s32.totalorder %s14, 1
    %p100 = por %p98, %p99
    %p101 = scmp.ne.s32.totalorder %s90, %s91
    %p102 = scmp.eq.s32.totalorder %s14, 0
    %p103 = por %p101, %p102
    %p104 = scmp.ne.s32.totalorder %s90, %s91
    %p105 = scmp.eq.s32.totalorder %s15, 1
    %p106 = por %p104, %p105
    %p108 = scmp.ne.s32.totalorder %s91, %s107
    %p109 = scmp.eq.s32.totalorder %s15, 0
    %p110 = por %p108, %p109
    %p111 = scmp.le.s32.totalorder 1, %s9
    %p112 = scmp.lt.s32.totalorder %s9, 3
    %p113 = pnand %p111, %p112
    %p114 = pneg %p113
    // Predicated region
    $region9: #{temporal_conv_layer.1} parent=5 // pred_check
      _
    $region10: #{temporal_conv_layer.1} parent=5 // pred_check_branch
      %116 = sbr.rel (%p113) target = $region12
    $region11: #{temporal_conv_layer.1} parent=5 // pred_region
      %s117 = ssub.s32 %s9, 1
      // Predicated region
      $region13: #{temporal_conv_layer.1} parent=11 // pred_check
        %p118 = pneg %p56
      $region14: #{temporal_conv_layer.1} parent=11 // pred_check_branch
        %120 = sbr.rel (%p118) target = $region16
      $region15: #{temporal_conv_layer.1} parent=11 // pred_region
        _
      $region16: #{temporal_conv_layer.1} parent=11 // pred_fallthru
        _
      // Predicated region
      $region17: #{temporal_conv_layer.1} parent=11 // pred_check
        %p121 = pneg %p77
      $region18: #{temporal_conv_layer.1} parent=11 // pred_check_branch
        %123 = sbr.rel (%p121) target = $region20
      $region19: #{temporal_conv_layer.1} parent=11 // pred_region
        _
      $region20: #{temporal_conv_layer.1} parent=11 // pred_fallthru
        _
    $region12: #{temporal_conv_layer.1} parent=5 // pred_fallthru
      _
    %p124 = scmp.lt.s32.totalorder %s9, 2
    // Predicated region
    $region21: #{temporal_conv_layer.1} parent=5 // pred_check
      %p125 = pneg %p124
    $region22: #{temporal_conv_layer.1} parent=5 // pred_check_branch
      %127 = sbr.rel (%p125) target = $region24
    $region23: #{temporal_conv_layer.1} parent=5 // pred_region
      // Predicated region
      $region25: #{temporal_conv_layer.1} parent=23 // pred_check
        %p128 = pneg %p29
      $region26: #{temporal_conv_layer.1} parent=23 // pred_check_branch
        %130 = sbr.rel (%p128) target = $region28
      $region27: #{temporal_conv_layer.1} parent=23 // pred_region
        %p131 = scmp.lt.s32.totalorder %s9, 1
        %s132 = scalar_select %p131, %s9, 1
        %s133 = smul.addr %s132, 32
        %s134 = smul.addr %s133, 4
        %s135 = scalar_lea.vmem %s0, %s134
      $region28: #{temporal_conv_layer.1} parent=23 // pred_fallthru
        _
    $region24: #{temporal_conv_layer.1} parent=5 // pred_fallthru
      _
    %p136 = scmp.le.s32.totalorder 1, %s9
    %p137 = scmp.lt.s32.totalorder %s9, 3
    %p138 = pnand %p136, %p137
    %p139 = pneg %p138
    // Predicated region
    $region29: #{temporal_conv_layer.1} parent=5 // pred_check
      _
    $region30: #{temporal_conv_layer.1} parent=5 // pred_check_branch
      %141 = sbr.rel (%p138) target = $region32
    $region31: #{temporal_conv_layer.1} parent=5 // pred_region
      %s142 = ssub.s32 %s9, 1
      %p143 = scmp.lt.s32.totalorder %s14, 1
      %s144 = scalar_select %p143, %s14, 1
      %s145 = smul.addr %s144, 32
      %s146 = smul.addr %s145, 4
      %s147 = scalar_lea.vmem %s0, %s146
      %p148 = pneg %p35
      %p149 = pneg %p32
      %p150 = pneg %p56
      %p151 = pneg %p53
      %p152 = pneg %p77
      %p153 = pneg %p74
      %p154 = pneg %p103
      %p155 = pneg %p100
      %p156 = scmp.lt.s32.totalorder %s14, 1
      %s157 = scalar_select %p156, %s14, 1
      %s158 = smul.addr %s157, 28
      %s159 = smul.addr %s158, 4
      %s160 = scalar_lea.vmem %s3, %s159
      %p161 = scmp.lt.s32.totalorder %s14, 1
      %s162 = scalar_select %p161, %s14, 1
      %s163 = smul.addr %s162, 32
      %s164 = smul.addr %s163, 4
      %s165 = scalar_lea.vmem %s0, %s164
      %p166 = scmp.lt.s32.totalorder %s14, 1
      %s167 = scalar_select %p166, %s14, 1
      %s168 = smul.addr %s167, 28
      %s169 = smul.addr %s168, 4
      %s170 = scalar_lea.vmem %s3, %s169
      %v172 = vld [vmem:[%s165] sm:$0xf]
      %v173 = vld [vmem:[%s165 + $0x4] sm:$0xf]
      %v174 = vld [vmem:[%s165 + $0x8] sm:$0xf]
      %v175 = vld [vmem:[%s165 + $0xc] sm:$0xf]
      %v176 = vld [vmem:[%s165 + $0x10] sm:$0xf]
      %v177 = vld [vmem:[%s165 + $0x14] sm:$0xf]
      %v178 = vld [vmem:[%s165 + $0x18] sm:$0xf]
      %v179 = vld [vmem:[%s165 + $0x1c] sm:$0xf]
      %v180 = vld [vmem:[%s165 + $0x20] sm:$0xf]
      %v181 = vld [vmem:[%s165 + $0x24] sm:$0xf]
      %v182 = vld [vmem:[%s165 + $0x28] sm:$0xf]
      %v183 = vld [vmem:[%s165 + $0x2c] sm:$0xf]
      %v184 = vld [vmem:[%s165 + $0x30] sm:$0xf]
      %v185 = vld [vmem:[%s165 + $0x34] sm:$0xf]
      %v186 = vld [vmem:[%s165 + $0x38] sm:$0xf]
      %v187 = vld [vmem:[%s165 + $0x3c] sm:$0xf]
      %v188 = vld [vmem:[%s165 + $0x40] sm:$0xf]
      %v189 = vld [vmem:[%s165 + $0x44] sm:$0xf]
      %v190 = vld [vmem:[%s165 + $0x48] sm:$0xf]
      %v191 = vld [vmem:[%s165 + $0x4c] sm:$0xf]
      %v192 = vld [vmem:[%s165 + $0x50] sm:$0xf]
      %v193 = vld [vmem:[%s165 + $0x54] sm:$0xf]
      %v194 = vld [vmem:[%s165 + $0x58] sm:$0xf]
      %v195 = vld [vmem:[%s165 + $0x5c] sm:$0xf]
      %v196 = vld [vmem:[%s165 + $0x60] sm:$0xf]
      %v197 = vld [vmem:[%s165 + $0x64] sm:$0xf]
      %v198 = vld [vmem:[%s165 + $0x68] sm:$0xf]
      %v199 = vld [vmem:[%s165 + $0x6c] sm:$0xf]
      %v200 = vld [vmem:[%s1] sm:$0xf]
      %v201 = vld [vmem:[%s165 + $0x70] sm:$0xf]
      %v202 = vld [vmem:[%s165 + $0x74] sm:$0xf]
      %v203 = vld [vmem:[%s165 + $0x78] sm:$0xf]
      %v204 = vld [vmem:[%s165 + $0x7c] sm:$0xf]
      %s205 = scalar_lea.vmem %s1, 4
      %v206 = vld [vmem:[%s205] sm:$0xf]
      %v235 = vunpack.c.l.b16 %v176
      %v236 = vunpack.c.l.b16 %v177
      %v237 = vunpack.c.l.b16 %v178
      %v238 = vunpack.c.l.b16 %v179
      %v239 = vunpack.c.l.b16 %v180
      %v240 = vunpack.c.l.b16 %v181
      %v241 = vunpack.c.l.b16 %v182
      %v242 = vunpack.c.l.b16 %v183
      %v243 = vunpack.c.l.b16 %v184
      %v244 = vunpack.c.l.b16 %v185
      %v245 = vunpack.c.l.b16 %v186
      %v246 = vunpack.c.l.b16 %v187
      %v247 = vunpack.c.l.b16 %v188
      %v248 = vunpack.c.l.b16 %v189
      %v249 = vunpack.c.l.b16 %v190
      %v250 = vunpack.c.l.b16 %v191
      %v251 = vunpack.c.l.b16 %v192
      %v252 = vunpack.c.l.b16 %v193
      %v253 = vunpack.c.l.b16 %v194
      %v254 = vunpack.c.l.b16 %v195
      %v255 = vunpack.c.l.b16 %v196
      %v256 = vunpack.c.l.b16 %v197
      %v257 = vunpack.c.l.b16 %v198
      %v258 = vunpack.c.l.b16 %v199
      %v259 = vunpack.c.l.b16 %v201
      %v260 = vunpack.c.l.b16 %v202
      %v261 = vunpack.c.l.b16 %v203
      %v262 = vunpack.c.l.b16 %v204
      %v263 = vpack.c.b16 %v236, %v235
      %v264 = vpack.c.b16 %v238, %v237
      %v265 = vpack.c.b16 %v240, %v239
      %v266 = vpack.c.b16 %v242, %v241
      %v267 = vpack.c.b16 %v244, %v243
      %v268 = vpack.c.b16 %v246, %v245
      %v269 = vpack.c.b16 %v248, %v247
      %v270 = vpack.c.b16 %v250, %v249
      %v271 = vpack.c.b16 %v252, %v251
      %v272 = vpack.c.b16 %v254, %v253
      %v273 = vpack.c.b16 %v256, %v255
      %v274 = vpack.c.b16 %v258, %v257
      %v275 = vpack.c.b16 %v260, %v259
      %v276 = vpack.c.b16 %v262, %v261
      %v279 = vunpack.c.l.s4 1983009808
      %v280 = vunpack.c.0.s8 %v279
      %v281 = vlaneseq
      %v282 = vshrl.u32 %v281, 7
      %v283 = vsub.s32 %v280, %v282
      %v284 = vrot.slane %v206, %v283
      %v285 = vcombine.high %v284, %v284
      %vm286 = vcmask 31744
      %v288 = vsel %vm286, %v263, 0
      %v291 = vsel %vm286, %v264, 0
      %v294 = vsel %vm286, %v265, 0
      %v297 = vsel %vm286, %v266, 0
      %v300 = vsel %vm286, %v267, 0
      %v303 = vsel %vm286, %v268, 0
      %v306 = vsel %vm286, %v269, 0
      %v309 = vsel %vm286, %v270, 0
      %v312 = vsel %vm286, %v271, 0
      %v315 = vsel %vm286, %v272, 0
      %v318 = vsel %vm286, %v273, 0
      %v321 = vsel %vm286, %v274, 0
      %v324 = vsel %vm286, %v275, 0
      %v327 = vsel %vm286, %v276, 0
      %vm329 = vcmask 1041408
      %v331 = vsel %vm329, %v284, 0
      %v334 = vsel %vm329, %v285, 0
      %336 = vmatprep.subr.bf16.mxu0 %v334
      %337 = vmatpush1.bf16.msra.mxu0 %v331
      %338 = vmatprep.subr.bf16.mxu0 0
      %339 = vmatpush1.bf16.msra.mxu0 0
      %340 = vmatprep.subr.bf16.mxu0 0
      %341 = vmatpush1.bf16.msra.mxu0 0
      %342 = vmatprep.subr.bf16.mxu0 0
      %343 = vmatpush1.bf16.msra.mxu0 0
      %344 = vmatprep.subr.bf16.mxu0 0
      %345 = vmatpush1.bf16.msra.mxu0 0
      %346 = vmatprep.subr.bf16.mxu0 0
      %347 = vmatpush1.bf16.msra.mxu0 0
      %348 = vmatprep.subr.bf16.mxu0 0
      %349 = vmatpush1.bf16.msra.mxu0 0
      %350 = vmatprep.subr.bf16.mxu0 0
      %351 = vmatpush1.bf16.msra.mxu0 0
      %352 = vmatprep.subr.bf16.mxu0 0
      %353 = vmatpush1.bf16.msra.mxu0 0
      %354 = vmatprep.subr.bf16.mxu0 0
      %355 = vmatpush1.bf16.msra.mxu0 0
      %356 = vmatprep.subr.bf16.mxu0 0
      %357 = vmatpush1.bf16.msra.mxu0 0
      %358 = vmatprep.subr.bf16.mxu0 0
      %359 = vmatpush1.bf16.msra.mxu0 0
      %360 = vmatprep.subr.bf16.mxu0 0
      %361 = vmatpush1.bf16.msra.mxu0 0
      %362 = vmatprep.subr.bf16.mxu0 0
      %363 = vmatpush1.bf16.msra.mxu0 0
      %364 = vmatprep.subr.bf16.mxu0 0
      %365 = vmatpush1.bf16.msra.mxu0 0
      %366 = vmatprep.subr.bf16.mxu0 0
      %367 = vmatpush1.bf16.msra.mxu0 0
      %368 = vmatprep.mubr.bf16.mxu0 0
      %369 = vmatmul.mubr.bf16.gmra.mrb[0].mxu0 %v288
      %v370 = vpop.f32.mrb[0].mxu0
      %v371 = vadd.f32 0.0, %v370
      %v372 = vpop.f32.mrb[0].mxu0
      %v373 = vadd.f32 0.0, %v372
      %v374 = vpop.f32.mrb[0].mxu0
      %v375 = vadd.f32 0.0, %v374
      %v376 = vpop.f32.mrb[0].mxu0
      %v377 = vadd.f32 0.0, %v376
      %378 = vmatprep.mubr.bf16.mxu0 0
      %379 = vmatmul.mubr.bf16.gmra.mrb[0].mxu0 %v291
      %v380 = vpop.f32.mrb[0].mxu0
      %v381 = vadd.f32 0.0, %v380
      %v382 = vpop.f32.mrb[0].mxu0
      %v383 = vadd.f32 0.0, %v382
      %v384 = vpop.f32.mrb[0].mxu0
      %v385 = vadd.f32 0.0, %v384
      %v386 = vpop.f32.mrb[0].mxu0
      %v387 = vadd.f32 0.0, %v386
      %388 = vmatprep.mubr.bf16.mxu0 0
      %389 = vmatmul.mubr.bf16.gmra.mrb[0].mxu0 %v294
      %v390 = vpop.f32.mrb[0].mxu0
      %v391 = vadd.f32 0.0, %v390
      %v392 = vpop.f32.mrb[0].mxu0
      %v393 = vadd.f32 0.0, %v392
      %v394 = vpop.f32.mrb[0].mxu0
      %v395 = vadd.f32 0.0, %v394
      %v396 = vpop.f32.mrb[0].mxu0
      %v397 = vadd.f32 0.0, %v396
      %398 = vmatprep.mubr.bf16.mxu0 0
      %399 = vmatmul.mubr.bf16.gmra.mrb[0].mxu0 %v297
      %v400 = vpop.f32.mrb[0].mxu0
      %v401 = vadd.f32 0.0, %v400
      %v402 = vpop.f32.mrb[0].mxu0
      %v403 = vadd.f32 0.0, %v402
      %v404 = vpop.f32.mrb[0].mxu0
      %v405 = vadd.f32 0.0, %v404
      %v406 = vpop.f32.mrb[0].mxu0
      %v407 = vadd.f32 0.0, %v406
      %408 = vmatprep.mubr.bf16.mxu0 0
      %409 = vmatmul.mubr.bf16.gmra.mrb[0].mxu0 %v300
      %v410 = vpop.f32.mrb[0].mxu0
      %v411 = vadd.f32 0.0, %v410
      %v412 = vpop.f32.mrb[0].mxu0
      %v413 = vadd.f32 0.0, %v412
      %v414 = vpop.f32.mrb[0].mxu0
      %v415 = vadd.f32 0.0, %v414
      %v416 = vpop.f32.mrb[0].mxu0
      %v417 = vadd.f32 0.0, %v416
      %418 = vmatprep.mubr.bf16.mxu0 0
      %419 = vmatmul.mubr.bf16.gmra.mrb[0].mxu0 %v303
      %v420 = vpop.f32.mrb[0].mxu0
      %v421 = vadd.f32 0.0, %v420
      %v422 = vpop.f32.mrb[0].mxu0
      %v423 = vadd.f32 0.0, %v422
      %v424 = vpop.f32.mrb[0].mxu0
      %v425 = vadd.f32 0.0, %v424
      %v426 = vpop.f32.mrb[0].mxu0
      %v427 = vadd.f32 0.0, %v426
      %428 = vmatprep.mubr.bf16.mxu0 0
      %429 = vmatmul.mubr.bf16.gmra.mrb[0].mxu0 %v306
      %v430 = vpop.f32.mrb[0].mxu0
      %v431 = vadd.f32 0.0, %v430
      %v432 = vpop.f32.mrb[0].mxu0
      %v433 = vadd.f32 0.0, %v432
      %v434 = vpop.f32.mrb[0].mxu0
      %v435 = vadd.f32 0.0, %v434
      %v436 = vpop.f32.mrb[0].mxu0
      %v437 = vadd.f32 0.0, %v436
      %438 = vmatprep.mubr.bf16.mxu0 0
      %439 = vmatmul.mubr.bf16.gmra.mrb[0].mxu0 %v309
      %v440 = vpop.f32.mrb[0].mxu0
      %v441 = vadd.f32 0.0, %v440
      %v442 = vpop.f32.mrb[0].mxu0
      %v443 = vadd.f32 0.0, %v442
      %v444 = vpop.f32.mrb[0].mxu0
      %v445 = vadd.f32 0.0, %v444
      %v446 = vpop.f32.mrb[0].mxu0
      %v447 = vadd.f32 0.0, %v446
      %448 = vmatprep.mubr.bf16.mxu0 0
      %449 = vmatmul.mubr.bf16.gmra.mrb[0].mxu0 %v312
      %v450 = vpop.f32.mrb[0].mxu0
      %v451 = vadd.f32 0.0, %v450
      %v452 = vpop.f32.mrb[0].mxu0
      %v453 = vadd.f32 0.0, %v452
      %v454 = vpop.f32.mrb[0].mxu0
      %v455 = vadd.f32 0.0, %v454
      %v456 = vpop.f32.mrb[0].mxu0
      %v457 = vadd.f32 0.0, %v456
      %458 = vmatprep.mubr.bf16.mxu0 0
      %459 = vmatmul.mubr.bf16.gmra.mrb[0].mxu0 %v315
      %v460 = vpop.f32.mrb[0].mxu0
      %v461 = vadd.f32 0.0, %v460
      %v462 = vpop.f32.mrb[0].mxu0
      %v463 = vadd.f32 0.0, %v462
      %v464 = vpop.f32.mrb[0].mxu0
      %v465 = vadd.f32 0.0, %v464
      %v466 = vpop.f32.mrb[0].mxu0
      %v467 = vadd.f32 0.0, %v466
      %468 = vmatprep.mubr.bf16.mxu0 0
      %469 = vmatmul.mubr.bf16.gmra.mrb[0].mxu0 %v318
      %v470 = vpop.f32.mrb[0].mxu0
      %v471 = vadd.f32 0.0, %v470
      %v472 = vpop.f32.mrb[0].mxu0
      %v473 = vadd.f32 0.0, %v472
      %v474 = vpop.f32.mrb[0].mxu0
      %v475 = vadd.f32 0.0, %v474
      %v476 = vpop.f32.mrb[0].mxu0
      %v477 = vadd.f32 0.0, %v476
      %478 = vmatprep.mubr.bf16.mxu0 0
      %479 = vmatmul.mubr.bf16.gmra.mrb[0].mxu0 %v321
      %v480 = vpop.f32.mrb[0].mxu0
      %v481 = vadd.f32 0.0, %v480
      %v482 = vpop.f32.mrb[0].mxu0
      %v483 = vadd.f32 0.0, %v482
      %v484 = vpop.f32.mrb[0].mxu0
      %v485 = vadd.f32 0.0, %v484
      %v486 = vpop.f32.mrb[0].mxu0
      %v487 = vadd.f32 0.0, %v486
      %488 = vmatprep.mubr.bf16.mxu0 0
      %489 = vmatmul.mubr.bf16.gmra.mrb[0].mxu0 %v324
      %v490 = vpop.f32.mrb[0].mxu0
      %v491 = vadd.f32 0.0, %v490
      %v492 = vpop.f32.mrb[0].mxu0
      %v493 = vadd.f32 0.0, %v492
      %v494 = vpop.f32.mrb[0].mxu0
      %v495 = vadd.f32 0.0, %v494
      %v496 = vpop.f32.mrb[0].mxu0
      %v497 = vadd.f32 0.0, %v496
      %498 = vmatprep.mubr.bf16.mxu0 0
      %499 = vmatmul.mubr.bf16.gmra.mrb[0].mxu0 %v327
      %v500 = vpop.f32.mrb[0].mxu0
      %v501 = vadd.f32 0.0, %v500
      %v502 = vpop.f32.mrb[0].mxu0
      %v503 = vadd.f32 0.0, %v502
      %v504 = vpop.f32.mrb[0].mxu0
      %v505 = vadd.f32 0.0, %v504
      %v506 = vpop.f32.mrb[0].mxu0
      %v507 = vadd.f32 0.0, %v506
      %508 = vdwg.mxu0
      %v513 = vunpack.c.l.b16 %v172
      %v514 = vunpack.c.l.b16 %v173
      %v515 = vunpack.c.l.b16 %v174
      %v516 = vunpack.c.l.b16 %v175
      %v517 = vpack.c.b16 %v514, %v513
      %v518 = vpack.c.b16 %v516, %v515
      %v521 = vunpack.c.l.s4 1983009808
      %v522 = vunpack.c.0.s8 %v521
      %v523 = vlaneseq
      %v524 = vshrl.u32 %v523, 7
      %v525 = vsub.s32 %v522, %v524
      %v526 = vrot.slane %v200, %v525
      %v527 = vcombine.high %v526, %v526
      %v529 = vsel %vm286, %v517, 0
      %v532 = vsel %vm286, %v518, 0
      %v535 = vsel %vm329, %v526, 0
      %v538 = vsel %vm329, %v527, 0
      %540 = vmatprep.subr.bf16.mxu0 %v538
      %541 = vmatpush1.bf16.msra.mxu0 %v535
      %542 = vmatprep.subr.bf16.mxu0 0
      %543 = vmatpush1.bf16.msra.mxu0 0
      %544 = vmatprep.subr.bf16.mxu0 0
      %545 = vmatpush1.bf16.msra.mxu0 0
      %546 = vmatprep.subr.bf16.mxu0 0
      %547 = vmatpush1.bf16.msra.mxu0 0
      %548 = vmatprep.subr.bf16.mxu0 0
      %549 = vmatpush1.bf16.msra.mxu0 0
      %550 = vmatprep.subr.bf16.mxu0 0
      %551 = vmatpush1.bf16.msra.mxu0 0
      %552 = vmatprep.subr.bf16.mxu0 0
      %553 = vmatpush1.bf16.msra.mxu0 0
      %554 = vmatprep.subr.bf16.mxu0 0
      %555 = vmatpush1.bf16.msra.mxu0 0
      %556 = vmatprep.subr.bf16.mxu0 0
      %557 = vmatpush1.bf16.msra.mxu0 0
      %558 = vmatprep.subr.bf16.mxu0 0
      %559 = vmatpush1.bf16.msra.mxu0 0
      %560 = vmatprep.subr.bf16.mxu0 0
      %561 = vmatpush1.bf16.msra.mxu0 0
      %562 = vmatprep.subr.bf16.mxu0 0
      %563 = vmatpush1.bf16.msra.mxu0 0
      %564 = vmatprep.subr.bf16.mxu0 0
      %565 = vmatpush1.bf16.msra.mxu0 0
      %566 = vmatprep.subr.bf16.mxu0 0
      %567 = vmatpush1.bf16.msra.mxu0 0
      %568 = vmatprep.subr.bf16.mxu0 0
      %569 = vmatpush1.bf16.msra.mxu0 0
      %570 = vmatprep.subr.bf16.mxu0 0
      %571 = vmatpush1.bf16.msra.mxu0 0
      %572 = vmatprep.mubr.bf16.mxu0 0
      %573 = vmatmul.mubr.bf16.gmra.mrb[0].mxu0 %v529
      %v574 = vpop.f32.mrb[0].mxu0
      %v575 = vadd.f32 %v371, %v574
      %v576 = vpop.f32.mrb[0].mxu0
      %v577 = vadd.f32 %v373, %v576
      %v578 = vpop.f32.mrb[0].mxu0
      %v579 = vadd.f32 %v375, %v578
      %v580 = vpop.f32.mrb[0].mxu0
      %v581 = vadd.f32 %v377, %v580
      %582 = vmatprep.mubr.bf16.mxu0 0
      %583 = vmatmul.mubr.bf16.gmra.mrb[0].mxu0 %v532
      %v584 = vpop.f32.mrb[0].mxu0
      %v585 = vadd.f32 %v381, %v584
      %v586 = vpop.f32.mrb[0].mxu0
      %v587 = vadd.f32 %v383, %v586
      %v588 = vpop.f32.mrb[0].mxu0
      %v589 = vadd.f32 %v385, %v588
      %v590 = vpop.f32.mrb[0].mxu0
      %v591 = vadd.f32 %v387, %v590
      %592 = vmatprep.mubr.bf16.mxu0 0
      %593 = vmatmul.mubr.bf16.gmra.mrb[0].mxu0 %v288
      %v594 = vpop.f32.mrb[0].mxu0
      %v595 = vadd.f32 %v391, %v594
      %v596 = vpop.f32.mrb[0].mxu0
      %v597 = vadd.f32 %v393, %v596
      %v598 = vpop.f32.mrb[0].mxu0
      %v599 = vadd.f32 %v395, %v598
      %v600 = vpop.f32.mrb[0].mxu0
      %v601 = vadd.f32 %v397, %v600
      %602 = vmatprep.mubr.bf16.mxu0 0
      %603 = vmatmul.mubr.bf16.gmra.mrb[0].mxu0 %v291
      %v604 = vpop.f32.mrb[0].mxu0
      %v605 = vadd.f32 %v401, %v604
      %v606 = vpop.f32.mrb[0].mxu0
      %v607 = vadd.f32 %v403, %v606
      %v608 = vpop.f32.mrb[0].mxu0
      %v609 = vadd.f32 %v405, %v608
      %v610 = vpop.f32.mrb[0].mxu0
      %v611 = vadd.f32 %v407, %v610
      %612 = vmatprep.mubr.bf16.mxu0 0
      %613 = vmatmul.mubr.bf16.gmra.mrb[0].mxu0 %v294
      %v614 = vpop.f32.mrb[0].mxu0
      %v615 = vadd.f32 %v411, %v614
      %v616 = vpop.f32.mrb[0].mxu0
      %v617 = vadd.f32 %v413, %v616
      %v618 = vpop.f32.mrb[0].mxu0
      %v619 = vadd.f32 %v415, %v618
      %v620 = vpop.f32.mrb[0].mxu0
      %v621 = vadd.f32 %v417, %v620
      %622 = vmatprep.mubr.bf16.mxu0 0
      %623 = vmatmul.mubr.bf16.gmra.mrb[0].mxu0 %v297
      %v624 = vpop.f32.mrb[0].mxu0
      %v625 = vadd.f32 %v421, %v624
      %v626 = vpop.f32.mrb[0].mxu0
      %v627 = vadd.f32 %v423, %v626
      %v628 = vpop.f32.mrb[0].mxu0
      %v629 = vadd.f32 %v425, %v628
      %v630 = vpop.f32.mrb[0].mxu0
      %v631 = vadd.f32 %v427, %v630
      %632 = vmatprep.mubr.bf16.mxu0 0
      %633 = vmatmul.mubr.bf16.gmra.mrb[0].mxu0 %v300
      %v634 = vpop.f32.mrb[0].mxu0
      %v635 = vadd.f32 %v431, %v634
      %v636 = vpop.f32.mrb[0].mxu0
      %v637 = vadd.f32 %v433, %v636
      %v638 = vpop.f32.mrb[0].mxu0
      %v639 = vadd.f32 %v435, %v638
      %v640 = vpop.f32.mrb[0].mxu0
      %v641 = vadd.f32 %v437, %v640
      %642 = vmatprep.mubr.bf16.mxu0 0
      %643 = vmatmul.mubr.bf16.gmra.mrb[0].mxu0 %v303
      %v644 = vpop.f32.mrb[0].mxu0
      %v645 = vadd.f32 %v441, %v644
      %v646 = vpop.f32.mrb[0].mxu0
      %v647 = vadd.f32 %v443, %v646
      %v648 = vpop.f32.mrb[0].mxu0
      %v649 = vadd.f32 %v445, %v648
      %v650 = vpop.f32.mrb[0].mxu0
      %v651 = vadd.f32 %v447, %v650
      %652 = vmatprep.mubr.bf16.mxu0 0
      %653 = vmatmul.mubr.bf16.gmra.mrb[0].mxu0 %v306
      %v654 = vpop.f32.mrb[0].mxu0
      %v655 = vadd.f32 %v451, %v654
      %v656 = vpop.f32.mrb[0].mxu0
      %v657 = vadd.f32 %v453, %v656
      %v658 = vpop.f32.mrb[0].mxu0
      %v659 = vadd.f32 %v455, %v658
      %v660 = vpop.f32.mrb[0].mxu0
      %v661 = vadd.f32 %v457, %v660
      %662 = vmatprep.mubr.bf16.mxu0 0
      %663 = vmatmul.mubr.bf16.gmra.mrb[0].mxu0 %v309
      %v664 = vpop.f32.mrb[0].mxu0
      %v665 = vadd.f32 %v461, %v664
      %v666 = vpop.f32.mrb[0].mxu0
      %v667 = vadd.f32 %v463, %v666
      %v668 = vpop.f32.mrb[0].mxu0
      %v669 = vadd.f32 %v465, %v668
      %v670 = vpop.f32.mrb[0].mxu0
      %v671 = vadd.f32 %v467, %v670
      %672 = vmatprep.mubr.bf16.mxu0 0
      %673 = vmatmul.mubr.bf16.gmra.mrb[0].mxu0 %v312
      %v674 = vpop.f32.mrb[0].mxu0
      %v675 = vadd.f32 %v471, %v674
      %v676 = vpop.f32.mrb[0].mxu0
      %v677 = vadd.f32 %v473, %v676
      %v678 = vpop.f32.mrb[0].mxu0
      %v679 = vadd.f32 %v475, %v678
      %v680 = vpop.f32.mrb[0].mxu0
      %v681 = vadd.f32 %v477, %v680
      %682 = vmatprep.mubr.bf16.mxu0 0
      %683 = vmatmul.mubr.bf16.gmra.mrb[0].mxu0 %v315
      %v684 = vpop.f32.mrb[0].mxu0
      %v685 = vadd.f32 %v481, %v684
      %v686 = vpop.f32.mrb[0].mxu0
      %v687 = vadd.f32 %v483, %v686
      %v688 = vpop.f32.mrb[0].mxu0
      %v689 = vadd.f32 %v485, %v688
      %v690 = vpop.f32.mrb[0].mxu0
      %v691 = vadd.f32 %v487, %v690
      %692 = vmatprep.mubr.bf16.mxu0 0
      %693 = vmatmul.mubr.bf16.gmra.mrb[0].mxu0 %v318
      %v694 = vpop.f32.mrb[0].mxu0
      %v695 = vadd.f32 %v491, %v694
      %v696 = vpop.f32.mrb[0].mxu0
      %v697 = vadd.f32 %v493, %v696
      %v698 = vpop.f32.mrb[0].mxu0
      %v699 = vadd.f32 %v495, %v698
      %v700 = vpop.f32.mrb[0].mxu0
      %v701 = vadd.f32 %v497, %v700
      %702 = vmatprep.mubr.bf16.mxu0 0
      %703 = vmatmul.mubr.bf16.gmra.mrb[0].mxu0 %v321
      %v704 = vpop.f32.mrb[0].mxu0
      %v705 = vadd.f32 %v501, %v704
      %v706 = vpop.f32.mrb[0].mxu0
      %v707 = vadd.f32 %v503, %v706
      %v708 = vpop.f32.mrb[0].mxu0
      %v709 = vadd.f32 %v505, %v708
      %v710 = vpop.f32.mrb[0].mxu0
      %v711 = vadd.f32 %v507, %v710
      %712 = vdwg.mxu0
      %v713 = vld [vmem:[%s2] sm:$0x3]
      %v715 = vlaneseq
      %v716 = vshrl.u32 %v715, 7
      %v717 = vsub.s32 0, %v716
      %v718 = vrot.slane %v713, %v717
      %v719 = vlaneseq
      %v720 = vshrl.u32 %v719, 7
      %v721 = vsub.s32 1, %v720
      %v722 = vrot.slane %v713, %v721
      %v725 = vadd.f32 %v575, %v718
      %v726 = vadd.f32 %v577, %v722
      %v727 = vadd.f32 %v579, %v718
      %v728 = vadd.f32 %v581, %v722
      %v729 = vadd.f32 %v585, %v718
      %v730 = vadd.f32 %v587, %v722
      %v731 = vadd.f32 %v589, %v718
      %v732 = vadd.f32 %v591, %v722
      %v733 = vadd.f32 %v595, %v718
      %v734 = vadd.f32 %v597, %v722
      %v735 = vadd.f32 %v599, %v718
      %v736 = vadd.f32 %v601, %v722
      %v737 = vadd.f32 %v605, %v718
      %v738 = vadd.f32 %v607, %v722
      %v739 = vadd.f32 %v609, %v718
      %v740 = vadd.f32 %v611, %v722
      %v741 = vadd.f32 %v615, %v718
      %v742 = vadd.f32 %v617, %v722
      %v743 = vadd.f32 %v619, %v718
      %v744 = vadd.f32 %v621, %v722
      %v745 = vadd.f32 %v625, %v718
      %v746 = vadd.f32 %v627, %v722
      %v747 = vadd.f32 %v629, %v718
      %v748 = vadd.f32 %v631, %v722
      %v749 = vadd.f32 %v635, %v718
      %v750 = vadd.f32 %v637, %v722
      %v751 = vadd.f32 %v639, %v718
      %v752 = vadd.f32 %v641, %v722
      %v753 = vadd.f32 %v645, %v718
      %v754 = vadd.f32 %v647, %v722
      %v755 = vadd.f32 %v649, %v718
      %v756 = vadd.f32 %v651, %v722
      %v757 = vadd.f32 %v655, %v718
      %v758 = vadd.f32 %v657, %v722
      %v759 = vadd.f32 %v659, %v718
      %v760 = vadd.f32 %v661, %v722
      %v761 = vadd.f32 %v665, %v718
      %v762 = vadd.f32 %v667, %v722
      %v763 = vadd.f32 %v669, %v718
      %v764 = vadd.f32 %v671, %v722
      %v765 = vadd.f32 %v675, %v718
      %v766 = vadd.f32 %v677, %v722
      %v767 = vadd.f32 %v679, %v718
      %v768 = vadd.f32 %v681, %v722
      %v769 = vadd.f32 %v685, %v718
      %v770 = vadd.f32 %v687, %v722
      %v771 = vadd.f32 %v689, %v718
      %v772 = vadd.f32 %v691, %v722
      %v773 = vadd.f32 %v695, %v718
      %v774 = vadd.f32 %v697, %v722
      %v775 = vadd.f32 %v699, %v718
      %v776 = vadd.f32 %v701, %v722
      %v777 = vadd.f32 %v705, %v718
      %v778 = vadd.f32 %v707, %v722
      %v779 = vadd.f32 %v709, %v718
      %v780 = vadd.f32 %v711, %v722
      %v781 = vxor.u32 %v726, 2147483648
      %v782 = vxor.u32 %v728, 2147483648
      %v783 = vxor.u32 %v730, 2147483648
      %v784 = vxor.u32 %v732, 2147483648
      %v785 = vxor.u32 %v734, 2147483648
      %v786 = vxor.u32 %v736, 2147483648
      %v787 = vxor.u32 %v738, 2147483648
      %v788 = vxor.u32 %v740, 2147483648
      %v789 = vxor.u32 %v742, 2147483648
      %v790 = vxor.u32 %v744, 2147483648
      %v791 = vxor.u32 %v746, 2147483648
      %v792 = vxor.u32 %v748, 2147483648
      %v793 = vxor.u32 %v750, 2147483648
      %v794 = vxor.u32 %v752, 2147483648
      %v795 = vxor.u32 %v754, 2147483648
      %v796 = vxor.u32 %v756, 2147483648
      %v797 = vxor.u32 %v758, 2147483648
      %v798 = vxor.u32 %v760, 2147483648
      %v799 = vxor.u32 %v762, 2147483648
      %v800 = vxor.u32 %v764, 2147483648
      %v801 = vxor.u32 %v766, 2147483648
      %v802 = vxor.u32 %v768, 2147483648
      %v803 = vxor.u32 %v770, 2147483648
      %v804 = vxor.u32 %v772, 2147483648
      %v805 = vxor.u32 %v774, 2147483648
      %v806 = vxor.u32 %v776, 2147483648
      %v807 = vxor.u32 %v778, 2147483648
      %v808 = vxor.u32 %v780, 2147483648
      %v809 = vmul.f32 %v781, 1.442695
      %v810 = vpow.pop %v809
      %v811 = vmul.f32 %v782, 1.442695
      %v812 = vpow.pop %v811
      %v813 = vmul.f32 %v783, 1.442695
      %v814 = vpow.pop %v813
      %v815 = vmul.f32 %v784, 1.442695
      %v816 = vpow.pop %v815
      %v817 = vmul.f32 %v785, 1.442695
      %v818 = vpow.pop %v817
      %v819 = vmul.f32 %v786, 1.442695
      %v820 = vpow.pop %v819
      %v821 = vmul.f32 %v787, 1.442695
      %v822 = vpow.pop %v821
      %v823 = vmul.f32 %v788, 1.442695
      %v824 = vpow.pop %v823
      %v825 = vmul.f32 %v789, 1.442695
      %v826 = vpow.pop %v825
      %v827 = vmul.f32 %v790, 1.442695
      %v828 = vpow.pop %v827
      %v829 = vmul.f32 %v791, 1.442695
      %v830 = vpow.pop %v829
      %v831 = vmul.f32 %v792, 1.442695
      %v832 = vpow.pop %v831
      %v833 = vmul.f32 %v793, 1.442695
      %v834 = vpow.pop %v833
      %v835 = vmul.f32 %v794, 1.442695
      %v836 = vpow.pop %v835
      %v837 = vmul.f32 %v795, 1.442695
      %v838 = vpow.pop %v837
      %v839 = vmul.f32 %v796, 1.442695
      %v840 = vpow.pop %v839
      %v841 = vmul.f32 %v797, 1.442695
      %v842 = vpow.pop %v841
      %v843 = vmul.f32 %v798, 1.442695
      %v844 = vpow.pop %v843
      %v845 = vmul.f32 %v799, 1.442695
      %v846 = vpow.pop %v845
      %v847 = vmul.f32 %v800, 1.442695
      %v848 = vpow.pop %v847
      %v849 = vmul.f32 %v801, 1.442695
      %v850 = vpow.pop %v849
      %v851 = vmul.f32 %v802, 1.442695
      %v852 = vpow.pop %v851
      %v853 = vmul.f32 %v803, 1.442695
      %v854 = vpow.pop %v853
      %v855 = vmul.f32 %v804, 1.442695
      %v856 = vpow.pop %v855
      %v857 = vmul.f32 %v805, 1.442695
      %v858 = vpow.pop %v857
      %v859 = vmul.f32 %v806, 1.442695
      %v860 = vpow.pop %v859
      %v861 = vmul.f32 %v807, 1.442695
      %v862 = vpow.pop %v861
      %v863 = vmul.f32 %v808, 1.442695
      %v864 = vpow.pop %v863
      %v865 = vadd.f32 %v810, 1.0
      %v866 = vadd.f32 %v812, 1.0
      %v867 = vadd.f32 %v814, 1.0
      %v868 = vadd.f32 %v816, 1.0
      %v869 = vadd.f32 %v818, 1.0
      %v870 = vadd.f32 %v820, 1.0
      %v871 = vadd.f32 %v822, 1.0
      %v872 = vadd.f32 %v824, 1.0
      %v873 = vadd.f32 %v826, 1.0
      %v874 = vadd.f32 %v828, 1.0
      %v875 = vadd.f32 %v830, 1.0
      %v876 = vadd.f32 %v832, 1.0
      %v877 = vadd.f32 %v834, 1.0
      %v878 = vadd.f32 %v836, 1.0
      %v879 = vadd.f32 %v838, 1.0
      %v880 = vadd.f32 %v840, 1.0
      %v881 = vadd.f32 %v842, 1.0
      %v882 = vadd.f32 %v844, 1.0
      %v883 = vadd.f32 %v846, 1.0
      %v884 = vadd.f32 %v848, 1.0
      %v885 = vadd.f32 %v850, 1.0
      %v886 = vadd.f32 %v852, 1.0
      %v887 = vadd.f32 %v854, 1.0
      %v888 = vadd.f32 %v856, 1.0
      %v889 = vadd.f32 %v858, 1.0
      %v890 = vadd.f32 %v860, 1.0
      %v891 = vadd.f32 %v862, 1.0
      %v892 = vadd.f32 %v864, 1.0
      %v893 = vrcp.pop %v865
      %v894 = vmul.f32 1.0, %v893
      %v895 = vrcp.pop %v866
      %v896 = vmul.f32 1.0, %v895
      %v897 = vrcp.pop %v867
      %v898 = vmul.f32 1.0, %v897
      %v899 = vrcp.pop %v868
      %v900 = vmul.f32 1.0, %v899
      %v901 = vrcp.pop %v869
      %v902 = vmul.f32 1.0, %v901
      %v903 = vrcp.pop %v870
      %v904 = vmul.f32 1.0, %v903
      %v905 = vrcp.pop %v871
      %v906 = vmul.f32 1.0, %v905
      %v907 = vrcp.pop %v872
      %v908 = vmul.f32 1.0, %v907
      %v909 = vrcp.pop %v873
      %v910 = vmul.f32 1.0, %v909
      %v911 = vrcp.pop %v874
      %v912 = vmul.f32 1.0, %v911
      %v913 = vrcp.pop %v875
      %v914 = vmul.f32 1.0, %v913
      %v915 = vrcp.pop %v876
      %v916 = vmul.f32 1.0, %v915
      %v917 = vrcp.pop %v877
      %v918 = vmul.f32 1.0, %v917
      %v919 = vrcp.pop %v878
      %v920 = vmul.f32 1.0, %v919
      %v921 = vrcp.pop %v879
      %v922 = vmul.f32 1.0, %v921
      %v923 = vrcp.pop %v880
      %v924 = vmul.f32 1.0, %v923
      %v925 = vrcp.pop %v881
      %v926 = vmul.f32 1.0, %v925
      %v927 = vrcp.pop %v882
      %v928 = vmul.f32 1.0, %v927
      %v929 = vrcp.pop %v883
      %v930 = vmul.f32 1.0, %v929
      %v931 = vrcp.pop %v884
      %v932 = vmul.f32 1.0, %v931
      %v933 = vrcp.pop %v885
      %v934 = vmul.f32 1.0, %v933
      %v935 = vrcp.pop %v886
      %v936 = vmul.f32 1.0, %v935
      %v937 = vrcp.pop %v887
      %v938 = vmul.f32 1.0, %v937
      %v939 = vrcp.pop %v888
      %v940 = vmul.f32 1.0, %v939
      %v941 = vrcp.pop %v889
      %v942 = vmul.f32 1.0, %v941
      %v943 = vrcp.pop %v890
      %v944 = vmul.f32 1.0, %v943
      %v945 = vrcp.pop %v891
      %v946 = vmul.f32 1.0, %v945
      %v947 = vrcp.pop %v892
      %v948 = vmul.f32 1.0, %v947
      %v949 = vmul.f32 %v725, %v894
      %v950 = vmul.f32 %v727, %v896
      %v951 = vmul.f32 %v729, %v898
      %v952 = vmul.f32 %v731, %v900
      %v953 = vmul.f32 %v733, %v902
      %v954 = vmul.f32 %v735, %v904
      %v955 = vmul.f32 %v737, %v906
      %v956 = vmul.f32 %v739, %v908
      %v957 = vmul.f32 %v741, %v910
      %v958 = vmul.f32 %v743, %v912
      %v959 = vmul.f32 %v745, %v914
      %v960 = vmul.f32 %v747, %v916
      %v961 = vmul.f32 %v749, %v918
      %v962 = vmul.f32 %v751, %v920
      %v963 = vmul.f32 %v753, %v922
      %v964 = vmul.f32 %v755, %v924
      %v965 = vmul.f32 %v757, %v926
      %v966 = vmul.f32 %v759, %v928
      %v967 = vmul.f32 %v761, %v930
      %v968 = vmul.f32 %v763, %v932
      %v969 = vmul.f32 %v765, %v934
      %v970 = vmul.f32 %v767, %v936
      %v971 = vmul.f32 %v769, %v938
      %v972 = vmul.f32 %v771, %v940
      %v973 = vmul.f32 %v773, %v942
      %v974 = vmul.f32 %v775, %v944
      %v975 = vmul.f32 %v777, %v946
      %v976 = vmul.f32 %v779, %v948
      %v977 = vpack.c.bf16 %v950, %v949
      %v978 = vpack.c.bf16 %v952, %v951
      %v979 = vpack.c.bf16 %v954, %v953
      %v980 = vpack.c.bf16 %v956, %v955
      %v981 = vpack.c.bf16 %v958, %v957
      %v982 = vpack.c.bf16 %v960, %v959
      %v983 = vpack.c.bf16 %v962, %v961
      %v984 = vpack.c.bf16 %v964, %v963
      %v985 = vpack.c.bf16 %v966, %v965
      %v986 = vpack.c.bf16 %v968, %v967
      %v987 = vpack.c.bf16 %v970, %v969
      %v988 = vpack.c.bf16 %v972, %v971
      %v989 = vpack.c.bf16 %v974, %v973
      %v990 = vpack.c.bf16 %v976, %v975
      %v1005 = vunpack.c.l.b16 %v977
      %v1006 = vunpack.c.h.b16 %v977
      %v1007 = vunpack.c.l.b16 %v978
      %v1008 = vunpack.c.h.b16 %v978
      %v1009 = vunpack.c.l.b16 %v979
      %v1010 = vunpack.c.h.b16 %v979
      %v1011 = vunpack.c.l.b16 %v980
      %v1012 = vunpack.c.h.b16 %v980
      %v1013 = vunpack.c.l.b16 %v981
      %v1014 = vunpack.c.h.b16 %v981
      %v1015 = vunpack.c.l.b16 %v982
      %v1016 = vunpack.c.h.b16 %v982
      %v1017 = vunpack.c.l.b16 %v983
      %v1018 = vunpack.c.h.b16 %v983
      %v1019 = vunpack.c.l.b16 %v984
      %v1020 = vunpack.c.h.b16 %v984
      %v1021 = vunpack.c.l.b16 %v985
      %v1022 = vunpack.c.h.b16 %v985
      %v1023 = vunpack.c.l.b16 %v986
      %v1024 = vunpack.c.h.b16 %v986
      %v1025 = vunpack.c.l.b16 %v987
      %v1026 = vunpack.c.h.b16 %v987
      %v1027 = vunpack.c.l.b16 %v988
      %v1028 = vunpack.c.h.b16 %v988
      %v1029 = vunpack.c.l.b16 %v989
      %v1030 = vunpack.c.h.b16 %v989
      %v1031 = vunpack.c.l.b16 %v990
      %v1032 = vunpack.c.h.b16 %v990
      %v1033 = vpack.c.b16 %v1005, %v1005
      %v1034 = vpack.c.b16 %v1006, %v1006
      %v1035 = vpack.c.b16 %v1007, %v1007
      %v1036 = vpack.c.b16 %v1008, %v1008
      %v1037 = vpack.c.b16 %v1009, %v1009
      %v1038 = vpack.c.b16 %v1010, %v1010
      %v1039 = vpack.c.b16 %v1011, %v1011
      %v1040 = vpack.c.b16 %v1012, %v1012
      %v1041 = vpack.c.b16 %v1013, %v1013
      %v1042 = vpack.c.b16 %v1014, %v1014
      %v1043 = vpack.c.b16 %v1015, %v1015
      %v1044 = vpack.c.b16 %v1016, %v1016
      %v1045 = vpack.c.b16 %v1017, %v1017
      %v1046 = vpack.c.b16 %v1018, %v1018
      %v1047 = vpack.c.b16 %v1019, %v1019
      %v1048 = vpack.c.b16 %v1020, %v1020
      %v1049 = vpack.c.b16 %v1021, %v1021
      %v1050 = vpack.c.b16 %v1022, %v1022
      %v1051 = vpack.c.b16 %v1023, %v1023
      %v1052 = vpack.c.b16 %v1024, %v1024
      %v1053 = vpack.c.b16 %v1025, %v1025
      %v1054 = vpack.c.b16 %v1026, %v1026
      %v1055 = vpack.c.b16 %v1027, %v1027
      %v1056 = vpack.c.b16 %v1028, %v1028
      %v1057 = vpack.c.b16 %v1029, %v1029
      %v1058 = vpack.c.b16 %v1030, %v1030
      %v1059 = vpack.c.b16 %v1031, %v1031
      %v1060 = vpack.c.b16 %v1032, %v1032
      %vm1089 = vcmask 60416
      %1090 = vst.msk [vmem:[%s170] sm:$0xf] %vm1089, %v1033
      %1091 = vst.msk [vmem:[%s170 + $0x4] sm:$0xf] %vm1089, %v1034
      %1092 = vst.msk [vmem:[%s170 + $0x8] sm:$0xf] %vm1089, %v1035
      %1093 = vst.msk [vmem:[%s170 + $0xc] sm:$0xf] %vm1089, %v1036
      %1094 = vst.msk [vmem:[%s170 + $0x10] sm:$0xf] %vm1089, %v1037
      %1095 = vst.msk [vmem:[%s170 + $0x14] sm:$0xf] %vm1089, %v1038
      %1096 = vst.msk [vmem:[%s170 + $0x18] sm:$0xf] %vm1089, %v1039
      %1097 = vst.msk [vmem:[%s170 + $0x1c] sm:$0xf] %vm1089, %v1040
      %1098 = vst.msk [vmem:[%s170 + $0x20] sm:$0xf] %vm1089, %v1041
      %1099 = vst.msk [vmem:[%s170 + $0x24] sm:$0xf] %vm1089, %v1042
      %1100 = vst.msk [vmem:[%s170 + $0x28] sm:$0xf] %vm1089, %v1043
      %1101 = vst.msk [vmem:[%s170 + $0x2c] sm:$0xf] %vm1089, %v1044
      %1102 = vst.msk [vmem:[%s170 + $0x30] sm:$0xf] %vm1089, %v1045
      %1103 = vst.msk [vmem:[%s170 + $0x34] sm:$0xf] %vm1089, %v1046
      %1104 = vst.msk [vmem:[%s170 + $0x38] sm:$0xf] %vm1089, %v1047
      %1105 = vst.msk [vmem:[%s170 + $0x3c] sm:$0xf] %vm1089, %v1048
      %1106 = vst.msk [vmem:[%s170 + $0x40] sm:$0xf] %vm1089, %v1049
      %1107 = vst.msk [vmem:[%s170 + $0x44] sm:$0xf] %vm1089, %v1050
      %1108 = vst.msk [vmem:[%s170 + $0x48] sm:$0xf] %vm1089, %v1051
      %1109 = vst.msk [vmem:[%s170 + $0x4c] sm:$0xf] %vm1089, %v1052
      %1110 = vst.msk [vmem:[%s170 + $0x50] sm:$0xf] %vm1089, %v1053
      %1111 = vst.msk [vmem:[%s170 + $0x54] sm:$0xf] %vm1089, %v1054
      %1112 = vst.msk [vmem:[%s170 + $0x58] sm:$0xf] %vm1089, %v1055
      %1113 = vst.msk [vmem:[%s170 + $0x5c] sm:$0xf] %vm1089, %v1056
      %1114 = vst.msk [vmem:[%s170 + $0x60] sm:$0xf] %vm1089, %v1057
      %1115 = vst.msk [vmem:[%s170 + $0x64] sm:$0xf] %vm1089, %v1058
      %1116 = vst.msk [vmem:[%s170 + $0x68] sm:$0xf] %vm1089, %v1059
      %1117 = vst.msk [vmem:[%s170 + $0x6c] sm:$0xf] %vm1089, %v1060
      %p1118 = scmp.lt.s32.totalorder %s14, 1
      %s1119 = scalar_select %p1118, %s14, 1
      %s1120 = smul.addr %s1119, 28
      %s1121 = smul.addr %s1120, 4
      %s1122 = scalar_lea.vmem %s3, %s1121
      // Predicated region
      $region33: #{temporal_conv_layer.1} parent=31 // pred_check
        %p1123 = pneg %p100
      $region34: #{temporal_conv_layer.1} parent=31 // pred_check_branch
        %1125 = sbr.rel (%p1123) target = $region36
      $region35: #{temporal_conv_layer.1} parent=31 // pred_region
        _
      $region36: #{temporal_conv_layer.1} parent=31 // pred_fallthru
        _
    $region32: #{temporal_conv_layer.1} parent=5 // pred_fallthru
      _
    %p1126 = scmp.le.s32.totalorder 2, %s9
    // Predicated region
    $region37: #{temporal_conv_layer.1} parent=5 // pred_check
      %p1127 = pneg %p1126
    $region38: #{temporal_conv_layer.1} parent=5 // pred_check_branch
      %1129 = sbr.rel (%p1127) target = $region40
    $region39: #{temporal_conv_layer.1} parent=5 // pred_region
      %s1130 = ssub.s32 %s9, 2
      // Predicated region
      $region41: #{temporal_conv_layer.1} parent=39 // pred_check
        %p1131 = pneg %p106
      $region42: #{temporal_conv_layer.1} parent=39 // pred_check_branch
        %1133 = sbr.rel (%p1131) target = $region44
      $region43: #{temporal_conv_layer.1} parent=39 // pred_region
        %p1134 = scmp.lt.s32.totalorder %s15, 1
        %s1135 = scalar_select %p1134, %s15, 1
        %s1136 = smul.addr %s1135, 28
        %s1137 = smul.addr %s1136, 4
        %s1138 = scalar_lea.vmem %s3, %s1137
      $region44: #{temporal_conv_layer.1} parent=39 // pred_fallthru
        _
    $region40: #{temporal_conv_layer.1} parent=5 // pred_fallthru
      _
  $region6: #{temporal_conv_layer.1} parent=0 // loop_footer
    %s13 = sadd.s32 1, %s9
  $region7: #{temporal_conv_layer.1} parent=0 // loop_footer_branch
    %8 = sbr.rel target = $region3
  $region8: #{temporal_conv_layer.1} parent=0 // loop_exit
    _

</llo_original>
